<compile_context>
chip_gen: v5e
topology: v5e:2x2
jax: 0.10.0
libtpu: 0.0.40
codegen_flags: <defaults>
</compile_context>

<pallas_src>
import functools

import jax
import jax.numpy as jnp
from jax.experimental import pallas as pl
from jax.experimental.pallas import tpu as pltpu


def _critic_kernel(n_layers, *refs):
    """Fused MLP: all matmuls + tanh activations run in one kernel invocation.

    refs = (x_ref, w0_ref, b0_ref, ..., w_head_ref, b_head_ref, o_ref)

    Weights arrive pre-cast to bf16 (host-side); activations are cast to bf16 only
    for the MXU operands, while bias add / tanh / accumulation stay in f32.
    """
    x_ref = refs[0]
    o_ref = refs[-1]
    param_refs = refs[1:-1]

    h = x_ref[...]                                    # (tile, state_dim)

    # Hidden layers: bf16 MXU matmul with f32 accumulate, f32 bias + tanh (EUP).
    for l in range(n_layers - 1):
        w = param_refs[2 * l][...]                    # (in, out) bf16
        b = param_refs[2 * l + 1][...]                # (1, out)  f32
        z = jnp.dot(h.astype(jnp.bfloat16), w,
                    preferred_element_type=jnp.float32) + b
        h = jnp.tanh(z)                               # f32 (v5e-safe)

    # Output head (out_dim == 1): h stays LHS (no transpose of the activation).
    w_head = param_refs[-2][...]                      # (h_last, 1) bf16 column
    b_head = param_refs[-1][...]                      # (1, 1)      f32
    q = jnp.dot(h.astype(jnp.bfloat16), w_head,
                preferred_element_type=jnp.float32) + b_head   # (tile, 1)
    o_ref[...] = q.astype(o_ref.dtype)


def critic_reference(state, weights, biases):
    """Plain-JAX (f32) reference of the same forward pass for validation/fallback."""
    h = state.astype(jnp.float32)
    n = len(weights)
    for l, (w, b) in enumerate(zip(weights, biases)):
        h = h @ w.astype(jnp.float32) + b.astype(jnp.float32)
        if l < n - 1:
            h = jnp.tanh(h)
    return h


def critic_forward(state, weights, biases, *, batch_tile=None,
                   min_pallas_batch=128, param_dtype=jnp.bfloat16):
    """Run the Critic forward pass with a single fused Pallas kernel.

    state:   (B, state_dim) float32 (pass bf16 to halve HBM traffic on v6e/v7x;
             the kernel keeps all non-MXU math in f32 regardless).
    weights: list of (in_dim, out_dim) arrays (PyTorch W.T layout)
    biases:  list of (1, out_dim) arrays
    returns: (B, 1) float32 q-values
    """
    B, state_dim = state.shape
    n_layers = len(weights)
    assert weights[-1].shape[1] == 1, "Critic head must have out_dim == 1"

    # ---- tiny-batch fallback -----------------------------------------------
    # Single-step actor/critic calls (a few hundred FLOPs) fuse fine in XLA; the
    # pallas_call dispatch would dominate, so skip Pallas below min_pallas_batch.
    if B < min_pallas_batch:
        return critic_reference(state, weights, biases)

    # ---- batch tiling --------------------------------------------------------
    # Goals: (a) tiles up to 1024 rows to amortize the ~0.35 us per-grid-step
    # overhead, (b) at least 2 grid steps when B >= 256 so the "parallel" grid
    # axis can be split across both v7x TensorCores, (c) tiles are multiples of
    # 128 whenever batch_tile < B (sublane/lane alignment).
    if batch_tile is None:
        if B <= 256:
            batch_tile = 128
        else:
            batch_tile = max(128, min(1024, ((B // 2) // 128) * 128))
    if batch_tile >= B:
        batch_tile = B                 # single full block; block dims == array dims
        B_pad = B
    else:
        assert batch_tile % 128 == 0, \
            "batch_tile must be a multiple of 128 when batch_tile < batch"
        B_pad = ((B + batch_tile - 1) // batch_tile) * batch_tile

    x = state
    if B_pad != B:
        x = jnp.pad(x, ((0, B_pad - B), (0, 0)))
    grid = (B_pad // batch_tile,)

    # ---- parameters & specs --------------------------------------------------
    # Weights are pre-cast to bf16 on the host (MXU operand dtype); biases stay f32.
    # Constant index_maps => each param is DMA'd once and stays VMEM-resident.
    flat_params = []
    in_specs = [pl.BlockSpec((batch_tile, state_dim), lambda i: (i, 0))]
    for l in range(n_layers - 1):
        w = weights[l].astype(param_dtype)            # (in, out)  bf16
        b = biases[l].astype(jnp.float32)             # (1, out)   f32
        flat_params += [w, b]
        in_specs.append(pl.BlockSpec(w.shape, lambda i: (0, 0)))
        in_specs.append(pl.BlockSpec(b.shape, lambda i: (0, 0)))
    w_head = weights[-1].astype(param_dtype)          # (h_last, 1) bf16 column
    b_head = biases[-1].reshape(1, 1).astype(jnp.float32)
    flat_params += [w_head, b_head]
    in_specs.append(pl.BlockSpec(w_head.shape, lambda i: (0, 0)))
    in_specs.append(pl.BlockSpec(b_head.shape, lambda i: (0, 0)))

    # Output: (B_pad, 1); each grid step writes a (batch_tile, 1) block.
    out_spec = pl.BlockSpec((batch_tile, 1), lambda i: (i, 0))

    # ---- cost estimate (advisory) --------------------------------------------
    dims = [state_dim] + [w.shape[1] for w in weights]
    flops = 2 * B_pad * sum(dims[i] * dims[i + 1] for i in range(n_layers))
    transcendentals = B_pad * sum(dims[1:-1])         # one tanh per hidden unit
    bytes_accessed = (x.size * x.dtype.itemsize
                      + sum(p.size * p.dtype.itemsize for p in flat_params)
                      + B_pad * 4)
    cost = pl.CostEstimate(flops=flops,
                           transcendentals=transcendentals,
                           bytes_accessed=bytes_accessed)

    kernel = functools.partial(_critic_kernel, n_layers)

    q = pl.pallas_call(
        kernel,
        out_shape=jax.ShapeDtypeStruct((B_pad, 1), jnp.float32),
        grid_spec=pltpu.PrefetchScalarGridSpec(
            num_scalar_prefetch=0,
            grid=grid,
            in_specs=in_specs,
            out_specs=out_spec,
        ),
        compiler_params=pltpu.CompilerParams(
            dimension_semantics=("parallel",)),
        cost_estimate=cost,
    )(x, *flat_params)

    return q[:B]


def init_critic_params(key, state_dim, hidden_layers):
    """Deterministic init mimicking PyTorch nn.Linear default (U[-1/sqrt(fan_in), +1/sqrt(fan_in)])."""
    dims = [state_dim] + list(hidden_layers) + [1]
    weights, biases = [], []
    for i in range(len(dims) - 1):
        fan_in, fan_out = dims[i], dims[i + 1]
        key, kw, kb = jax.random.split(key, 3)
        bound = 1.0 / jnp.sqrt(jnp.float32(fan_in))
        w = jax.random.uniform(kw, (fan_in, fan_out), jnp.float32, -bound, bound)
        b = jax.random.uniform(kb, (1, fan_out), jnp.float32, -bound, bound)
        weights.append(w)
        biases.append(b)
    return weights, biases


if __name__ == "__main__":
    key = jax.random.PRNGKey(0)

    # Small shapes consistent with the module: state_dim=32, hidden_layers=[64, 64].
    state_dim = 32
    hidden_layers = [64, 64]

    key, k_params = jax.random.split(key)
    weights, biases = init_critic_params(k_params, state_dim, hidden_layers)

    # bf16 MXU operands vs. f32 reference -> tolerance loosened accordingly.
    TOL = 2e-2

    # Case 1: B=256, explicit 128-row tiles -> grid=(2,) (exercises the tiled,
    # megacore-shardable path).
    key, k1 = jax.random.split(key)
    state_1 = jax.random.normal(k1, (256, state_dim), jnp.float32)
    q_1 = jax.block_until_ready(
        critic_forward(state_1, weights, biases, batch_tile=128))
    q_1_ref = critic_reference(state_1, weights, biases)
    assert q_1.shape == (256, 1), q_1.shape
    assert jnp.allclose(q_1, q_1_ref, atol=TOL, rtol=TOL), (
        float(jnp.max(jnp.abs(q_1 - q_1_ref))))

    # Case 2: non-divisible batch with the default tiling logic (padding + multi-step grid).
    key, k2 = jax.random.split(key)
    state_2 = jax.random.normal(k2, (300, state_dim), jnp.float32)
    q_2 = jax.block_until_ready(critic_forward(state_2, weights, biases))
    q_2_ref = critic_reference(state_2, weights, biases)
    assert q_2.shape == (300, 1), q_2.shape
    assert jnp.allclose(q_2, q_2_ref, atol=TOL, rtol=TOL), (
        float(jnp.max(jnp.abs(q_2 - q_2_ref))))

    # Case 3: tiny batch -> plain-XLA fallback path (exact f32 match).
    key, k3 = jax.random.split(key)
    state_3 = jax.random.normal(k3, (16, state_dim), jnp.float32)
    q_3 = jax.block_until_ready(critic_forward(state_3, weights, biases))
    q_3_ref = critic_reference(state_3, weights, biases)
    assert q_3.shape == (16, 1), q_3.shape
    assert jnp.allclose(q_3, q_3_ref, atol=1e-6, rtol=1e-6), (
        float(jnp.max(jnp.abs(q_3 - q_3_ref))))

    print("KERNEL_OK")
</pallas_src>

<mosaic_0001>
module attributes {stable_mosaic.version = 11 : i64} {
  func.func @_critic_kernel(%arg0: i32, %arg1: memref<128x32xf32, #tpu.memory_space<vmem>>, %arg2: memref<32x64xbf16, #tpu.memory_space<vmem>>, %arg3: memref<1x64xf32, #tpu.memory_space<vmem>>, %arg4: memref<64x64xbf16, #tpu.memory_space<vmem>>, %arg5: memref<1x64xf32, #tpu.memory_space<vmem>>, %arg6: memref<64x1xbf16, #tpu.memory_space<vmem>>, %arg7: memref<1x1xf32, #tpu.memory_space<vmem>>, %arg8: memref<128x1xf32, #tpu.memory_space<vmem>>) attributes {dimension_semantics = [#tpu.dimension_semantics<parallel>], iteration_bounds = array<i64: 2>, scalar_prefetch = 0 : i64, scratch_operands = 0 : i64, tpu.core_type = #tpu.core_type<tc>, window_params = [{transform_indices = @transform_0, window_bounds = array<i64: 128, 32>}, {pipeline_mode = #tpu.pipeline_mode<synchronous>, transform_indices = @transform_1, window_bounds = array<i64: 32, 64>}, {pipeline_mode = #tpu.pipeline_mode<synchronous>, transform_indices = @transform_2, window_bounds = array<i64: 1, 64>}, {pipeline_mode = #tpu.pipeline_mode<synchronous>, transform_indices = @transform_3, window_bounds = array<i64: 64, 64>}, {pipeline_mode = #tpu.pipeline_mode<synchronous>, transform_indices = @transform_4, window_bounds = array<i64: 1, 64>}, {pipeline_mode = #tpu.pipeline_mode<synchronous>, transform_indices = @transform_5, window_bounds = array<i64: 64, 1>}, {pipeline_mode = #tpu.pipeline_mode<synchronous>, transform_indices = @transform_6, window_bounds = array<i64: 1, 1>}, {transform_indices = @transform_7, window_bounds = array<i64: 128, 1>}]} {
    %c0 = arith.constant 0 : index
    %c0_0 = arith.constant 0 : index
    %0 = vector.load %arg1[%c0, %c0_0] : memref<128x32xf32, #tpu.memory_space<vmem>>, vector<128x32xf32>
    %c0_1 = arith.constant 0 : index
    %c0_2 = arith.constant 0 : index
    %1 = vector.load %arg2[%c0_1, %c0_2] : memref<32x64xbf16, #tpu.memory_space<vmem>>, vector<32x64xbf16>
    %c0_3 = arith.constant 0 : index
    %c0_4 = arith.constant 0 : index
    %2 = vector.load %arg3[%c0_3, %c0_4] : memref<1x64xf32, #tpu.memory_space<vmem>>, vector<1x64xf32>
    %3 = arith.truncf %0 : vector<128x32xf32> to vector<128x32xbf16>
    %cst = arith.constant dense<0.000000e+00> : vector<128x64xf32>
    %4 = tpu.matmul %3, %1, %cst {dimension_numbers = #tpu.dot_dimension_numbers<[1], [0], [0], [1], [0, 0, 1, 1], [], []>} : vector<128x32xbf16>, vector<32x64xbf16>, vector<128x64xf32> -> vector<128x64xf32>
    %5 = vector.broadcast %2 : vector<1x64xf32> to vector<128x64xf32>
    %6 = arith.addf %4, %5 : vector<128x64xf32>
    %7 = math.tanh %6 : vector<128x64xf32>
    %c0_5 = arith.constant 0 : index
    %c0_6 = arith.constant 0 : index
    %8 = vector.load %arg4[%c0_5, %c0_6] : memref<64x64xbf16, #tpu.memory_space<vmem>>, vector<64x64xbf16>
    %c0_7 = arith.constant 0 : index
    %c0_8 = arith.constant 0 : index
    %9 = vector.load %arg5[%c0_7, %c0_8] : memref<1x64xf32, #tpu.memory_space<vmem>>, vector<1x64xf32>
    %10 = arith.truncf %7 : vector<128x64xf32> to vector<128x64xbf16>
    %cst_9 = arith.constant dense<0.000000e+00> : vector<128x64xf32>
    %11 = tpu.matmul %10, %8, %cst_9 {dimension_numbers = #tpu.dot_dimension_numbers<[1], [0], [0], [1], [0, 0, 1, 1], [], []>} : vector<128x64xbf16>, vector<64x64xbf16>, vector<128x64xf32> -> vector<128x64xf32>
    %12 = vector.broadcast %9 : vector<1x64xf32> to vector<128x64xf32>
    %13 = arith.addf %11, %12 : vector<128x64xf32>
    %14 = math.tanh %13 : vector<128x64xf32>
    %c0_10 = arith.constant 0 : index
    %c0_11 = arith.constant 0 : index
    %15 = vector.load %arg6[%c0_10, %c0_11] : memref<64x1xbf16, #tpu.memory_space<vmem>>, vector<64x1xbf16>
    %c0_12 = arith.constant 0 : index
    %c0_13 = arith.constant 0 : index
    %16 = vector.load %arg7[%c0_12, %c0_13] : memref<1x1xf32, #tpu.memory_space<vmem>>, vector<1x1xf32>
    %17 = arith.truncf %14 : vector<128x64xf32> to vector<128x64xbf16>
    %cst_14 = arith.constant dense<0.000000e+00> : vector<128x1xf32>
    %18 = tpu.matmul %17, %15, %cst_14 {dimension_numbers = #tpu.dot_dimension_numbers<[1], [0], [0], [1], [0, 0, 1, 1], [], []>} : vector<128x64xbf16>, vector<64x1xbf16>, vector<128x1xf32> -> vector<128x1xf32>
    %19 = vector.broadcast %16 : vector<1x1xf32> to vector<128x1xf32>
    %20 = arith.addf %18, %19 : vector<128x1xf32>
    %c0_15 = arith.constant 0 : index
    %c0_16 = arith.constant 0 : index
    %21 = vector.load %arg8[%c0_15, %c0_16] : memref<128x1xf32, #tpu.memory_space<vmem>>, vector<128x1xf32>
    tpu.vector_store %arg8[%c0_15, %c0_16], %20 {strides = array<i32>} : memref<128x1xf32, #tpu.memory_space<vmem>>, vector<128x1xf32>,
    return
  }
  func.func @transform_0(%arg0: i32) -> (i32, i32) {
    %c0_i32 = arith.constant 0 : i32
    %c0_i32_0 = arith.constant 0 : i32
    return %arg0, %c0_i32 : i32, i32
  }
  func.func @transform_1(%arg0: i32) -> (i32, i32) {
    %c0_i32 = arith.constant 0 : i32
    %c0_i32_0 = arith.constant 0 : i32
    %c0_i32_1 = arith.constant 0 : i32
    return %c0_i32, %c0_i32_0 : i32, i32
  }
  func.func @transform_2(%arg0: i32) -> (i32, i32) {
    %c0_i32 = arith.constant 0 : i32
    %c0_i32_0 = arith.constant 0 : i32
    %c0_i32_1 = arith.constant 0 : i32
    return %c0_i32, %c0_i32_0 : i32, i32
  }
  func.func @transform_3(%arg0: i32) -> (i32, i32) {
    %c0_i32 = arith.constant 0 : i32
    %c0_i32_0 = arith.constant 0 : i32
    %c0_i32_1 = arith.constant 0 : i32
    return %c0_i32, %c0_i32_0 : i32, i32
  }
  func.func @transform_4(%arg0: i32) -> (i32, i32) {
    %c0_i32 = arith.constant 0 : i32
    %c0_i32_0 = arith.constant 0 : i32
    %c0_i32_1 = arith.constant 0 : i32
    return %c0_i32, %c0_i32_0 : i32, i32
  }
  func.func @transform_5(%arg0: i32) -> (i32, i32) {
    %c0_i32 = arith.constant 0 : i32
    %c0_i32_0 = arith.constant 0 : i32
    %c0_i32_1 = arith.constant 0 : i32
    return %c0_i32, %c0_i32_0 : i32, i32
  }
  func.func @transform_6(%arg0: i32) -> (i32, i32) {
    %c0_i32 = arith.constant 0 : i32
    %c0_i32_0 = arith.constant 0 : i32
    %c0_i32_1 = arith.constant 0 : i32
    return %c0_i32, %c0_i32_0 : i32, i32
  }
  func.func @transform_7(%arg0: i32) -> (i32, i32) {
    %c0_i32 = arith.constant 0 : i32
    %c0_i32_0 = arith.constant 0 : i32
    return %arg0, %c0_i32 : i32, i32
  }
}

</mosaic_0001>

<llo_original>
// kernel: tpu_custom_call.1
$region0: #{tpu_custom_call.1}
  #allocation0 [shape = 'u32[]', space=smem, size = 0x4, offset = 0x4, fixed_abs, tag = 'smem constant byte address 0x4 - core index']
  #allocation1 [shape = 'u32[72,128]{1,0:T(1,128)}', space=vmem, size = 0x9000, scoped, tag = 'internal scratch']
  #allocation2 [shape = 'f32[1,1]{1,0:T(1,128)S(1)}', space=vmem, size = 0x200, scoped, tag = 'scoped memory for tpu_custom_call.1']
  %s0 = inlined_call_operand.vmem [shape: f32[256,32], index: 0, kind: input, shape index: {}]
  %s1 = inlined_call_operand.vmem [shape: bf16[32,64], index: 1, kind: input, shape index: {}]
  %s2 = inlined_call_operand.vmem [shape: f32[1,64], index: 2, kind: input, shape index: {}]
  %s3 = inlined_call_operand.vmem [shape: bf16[64,64], index: 3, kind: input, shape index: {}]
  %s4 = inlined_call_operand.vmem [shape: f32[1,64], index: 4, kind: input, shape index: {}]
  %s5 = inlined_call_operand.vmem [shape: bf16[64,1], index: 5, kind: input, shape index: {}]
  %s6 = inlined_call_operand.<no memory space> [shape: f32[1,1], index: 6, kind: input, shape index: {}]
  %s7 = inlined_call_operand.vmem [shape: f32[256,1], index: 7, kind: output, shape index: {}]
  %s8 = sld [smem:[#allocation0]]
  $region61: #{tpu_custom_call.1} parent=0
    _
  %s10 = ssub.s32 1, %s8
  %s11 = scalar_select 0, %s10, %s8
  %v12 = vstv %s6
  %13 = vst [vmem:[#allocation2] sm:$0x1] %v12
  loop: start=0, step=1, limit=4
  $region2: #{tpu_custom_call.1} parent=0 // loop_pre_header
    _
  $region3: #{tpu_custom_call.1} parent=0 // loop_header
    %s15 = sphi 0, %s19
    %p16 = scmp.ge.s32.totalorder %s15, 4
    %s25 = sphi 0, %s27
    %s28 = sphi 0, %s25
    %s29 = sphi 0, %s28
    %s45 = sphi 0, %s29
    %s49 = sphi 0, %s49
    %s51 = sphi 0, %s49
    %s52 = sphi 0, %s51
    %s66 = sphi 0, %s52
    %s70 = sphi 0, %s70
    %s72 = sphi 0, %s70
    %s73 = sphi 0, %s72
    %s87 = sphi 0, %s73
    %s91 = sphi 0, %s91
    %s93 = sphi 0, %s91
    %s94 = sphi 0, %s93
    %s108 = sphi 0, %s94
    %s112 = sphi 0, %s112
    %s114 = sphi 0, %s112
    %s115 = sphi 0, %s114
    %s129 = sphi 0, %s115
    %s133 = sphi 0, %s133
    %s135 = sphi 0, %s133
    %s136 = sphi 0, %s135
    %s150 = sphi 0, %s136
    %s154 = sphi 0, %s154
    %s156 = sphi 0, %s154
    %s157 = sphi 0, %s156
    %s171 = sphi 0, %s157
    %s177 = sphi 0, %s179
    %s180 = sphi 0, %s177
    %s181 = sphi 0, %s180
    %s197 = sphi 0, %s181
  $region4: #{tpu_custom_call.1} parent=0 // loop_header_branch
    %18 = sbr.rel (%p16) target = $region8
  $region5: #{tpu_custom_call.1} parent=0 // loop_body
    %s20 = ssub.s32 %s15, 1
    %s21 = ssub.s32 %s15, 2
    %s22 = sadd.s32 %s15, 1
    %s23 = ssub.s32 %s15, %s22
    %p24 = scmp.eq.s32.totalorder %s23, 0
    %s26 = sadd.s32 %s25, 1
    %s27 = scalar_select %p24, %s25, %s26
    %p30 = pneg %p24
    %p31 = scmp.eq.s32.totalorder %s15, 1
    %p32 = por %p30, %p31
    %p33 = scmp.ne.s32.totalorder %s25, %s28
    %p34 = scmp.eq.s32.totalorder %s15, 0
    %p35 = por %p33, %p34
    %p36 = scmp.ne.s32.totalorder %s25, %s28
    %p37 = scmp.eq.s32.totalorder %s20, 1
    %p38 = por %p36, %p37
    %p39 = scmp.ne.s32.totalorder %s28, %s29
    %p40 = scmp.eq.s32.totalorder %s20, 0
    %p41 = por %p39, %p40
    %p42 = scmp.ne.s32.totalorder %s28, %s29
    %p43 = scmp.eq.s32.totalorder %s21, 1
    %p44 = por %p42, %p43
    %p46 = scmp.ne.s32.totalorder %s29, %s45
    %p47 = scmp.eq.s32.totalorder %s21, 0
    %p48 = por %p46, %p47
    %s50 = sadd.s32 %s49, 1
    %p53 = scmp.eq.s32.totalorder %s15, 1
    %p54 = scmp.ne.s32.totalorder %s49, %s51
    %p55 = scmp.eq.s32.totalorder %s15, 0
    %p56 = por %p54, %p55
    %p57 = scmp.ne.s32.totalorder %s49, %s51
    %p58 = scmp.eq.s32.totalorder %s20, 1
    %p59 = por %p57, %p58
    %p60 = scmp.ne.s32.totalorder %s51, %s52
    %p61 = scmp.eq.s32.totalorder %s20, 0
    %p62 = por %p60, %p61
    %p63 = scmp.ne.s32.totalorder %s51, %s52
    %p64 = scmp.eq.s32.totalorder %s21, 1
    %p65 = por %p63, %p64
    %p67 = scmp.ne.s32.totalorder %s52, %s66
    %p68 = scmp.eq.s32.totalorder %s21, 0
    %p69 = por %p67, %p68
    %s71 = sadd.s32 %s70, 1
    %p74 = scmp.eq.s32.totalorder %s15, 1
    %p75 = scmp.ne.s32.totalorder %s70, %s72
    %p76 = scmp.eq.s32.totalorder %s15, 0
    %p77 = por %p75, %p76
    %p78 = scmp.ne.s32.totalorder %s70, %s72
    %p79 = scmp.eq.s32.totalorder %s20, 1
    %p80 = por %p78, %p79
    %p81 = scmp.ne.s32.totalorder %s72, %s73
    %p82 = scmp.eq.s32.totalorder %s20, 0
    %p83 = por %p81, %p82
    %p84 = scmp.ne.s32.totalorder %s72, %s73
    %p85 = scmp.eq.s32.totalorder %s21, 1
    %p86 = por %p84, %p85
    %p88 = scmp.ne.s32.totalorder %s73, %s87
    %p89 = scmp.eq.s32.totalorder %s21, 0
    %p90 = por %p88, %p89
    %s92 = sadd.s32 %s91, 1
    %p95 = scmp.eq.s32.totalorder %s15, 1
    %p96 = scmp.ne.s32.totalorder %s91, %s93
    %p97 = scmp.eq.s32.totalorder %s15, 0
    %p98 = por %p96, %p97
    %p99 = scmp.ne.s32.totalorder %s91, %s93
    %p100 = scmp.eq.s32.totalorder %s20, 1
    %p101 = por %p99, %p100
    %p102 = scmp.ne.s32.totalorder %s93, %s94
    %p103 = scmp.eq.s32.totalorder %s20, 0
    %p104 = por %p102, %p103
    %p105 = scmp.ne.s32.totalorder %s93, %s94
    %p106 = scmp.eq.s32.totalorder %s21, 1
    %p107 = por %p105, %p106
    %p109 = scmp.ne.s32.totalorder %s94, %s108
    %p110 = scmp.eq.s32.totalorder %s21, 0
    %p111 = por %p109, %p110
    %s113 = sadd.s32 %s112, 1
    %p116 = scmp.eq.s32.totalorder %s15, 1
    %p117 = scmp.ne.s32.totalorder %s112, %s114
    %p118 = scmp.eq.s32.totalorder %s15, 0
    %p119 = por %p117, %p118
    %p120 = scmp.ne.s32.totalorder %s112, %s114
    %p121 = scmp.eq.s32.totalorder %s20, 1
    %p122 = por %p120, %p121
    %p123 = scmp.ne.s32.totalorder %s114, %s115
    %p124 = scmp.eq.s32.totalorder %s20, 0
    %p125 = por %p123, %p124
    %p126 = scmp.ne.s32.totalorder %s114, %s115
    %p127 = scmp.eq.s32.totalorder %s21, 1
    %p128 = por %p126, %p127
    %p130 = scmp.ne.s32.totalorder %s115, %s129
    %p131 = scmp.eq.s32.totalorder %s21, 0
    %p132 = por %p130, %p131
    %s134 = sadd.s32 %s133, 1
    %p137 = scmp.eq.s32.totalorder %s15, 1
    %p138 = scmp.ne.s32.totalorder %s133, %s135
    %p139 = scmp.eq.s32.totalorder %s15, 0
    %p140 = por %p138, %p139
    %p141 = scmp.ne.s32.totalorder %s133, %s135
    %p142 = scmp.eq.s32.totalorder %s20, 1
    %p143 = por %p141, %p142
    %p144 = scmp.ne.s32.totalorder %s135, %s136
    %p145 = scmp.eq.s32.totalorder %s20, 0
    %p146 = por %p144, %p145
    %p147 = scmp.ne.s32.totalorder %s135, %s136
    %p148 = scmp.eq.s32.totalorder %s21, 1
    %p149 = por %p147, %p148
    %p151 = scmp.ne.s32.totalorder %s136, %s150
    %p152 = scmp.eq.s32.totalorder %s21, 0
    %p153 = por %p151, %p152
    %s155 = sadd.s32 %s154, 1
    %p158 = scmp.eq.s32.totalorder %s15, 1
    %p159 = scmp.ne.s32.totalorder %s154, %s156
    %p160 = scmp.eq.s32.totalorder %s15, 0
    %p161 = por %p159, %p160
    %p162 = scmp.ne.s32.totalorder %s154, %s156
    %p163 = scmp.eq.s32.totalorder %s20, 1
    %p164 = por %p162, %p163
    %p165 = scmp.ne.s32.totalorder %s156, %s157
    %p166 = scmp.eq.s32.totalorder %s20, 0
    %p167 = por %p165, %p166
    %p168 = scmp.ne.s32.totalorder %s156, %s157
    %p169 = scmp.eq.s32.totalorder %s21, 1
    %p170 = por %p168, %p169
    %p172 = scmp.ne.s32.totalorder %s157, %s171
    %p173 = scmp.eq.s32.totalorder %s21, 0
    %p174 = por %p172, %p173
    %s175 = ssub.s32 %s15, %s22
    %p176 = scmp.eq.s32.totalorder %s175, 0
    %s178 = sadd.s32 %s177, 1
    %s179 = scalar_select %p176, %s177, %s178
    %p182 = pneg %p176
    %p183 = scmp.eq.s32.totalorder %s15, 1
    %p184 = por %p182, %p183
    %p185 = scmp.ne.s32.totalorder %s177, %s180
    %p186 = scmp.eq.s32.totalorder %s15, 0
    %p187 = por %p185, %p186
    %p188 = scmp.ne.s32.totalorder %s177, %s180
    %p189 = scmp.eq.s32.totalorder %s20, 1
    %p190 = por %p188, %p189
    %p191 = scmp.ne.s32.totalorder %s180, %s181
    %p192 = scmp.eq.s32.totalorder %s20, 0
    %p193 = por %p191, %p192
    %p194 = scmp.ne.s32.totalorder %s180, %s181
    %p195 = scmp.eq.s32.totalorder %s21, 1
    %p196 = por %p194, %p195
    %p198 = scmp.ne.s32.totalorder %s181, %s197
    %p199 = scmp.eq.s32.totalorder %s21, 0
    %p200 = por %p198, %p199
    %p201 = scmp.le.s32.totalorder 1, %s15
    %p202 = scmp.lt.s32.totalorder %s15, 3
    %p203 = pnand %p201, %p202
    %p204 = pneg %p203
    // Predicated region
    $region9: #{tpu_custom_call.1} parent=5 // pred_check
      _
    $region10: #{tpu_custom_call.1} parent=5 // pred_check_branch
      %206 = sbr.rel (%p203) target = $region12
    $region11: #{tpu_custom_call.1} parent=5 // pred_region
      %s207 = ssub.s32 %s15, 1
      // Predicated region
      $region13: #{tpu_custom_call.1} parent=11 // pred_check
        %p208 = pneg %p62
      $region14: #{tpu_custom_call.1} parent=11 // pred_check_branch
        %210 = sbr.rel (%p208) target = $region16
      $region15: #{tpu_custom_call.1} parent=11 // pred_region
        _
      $region16: #{tpu_custom_call.1} parent=11 // pred_fallthru
        _
      // Predicated region
      $region17: #{tpu_custom_call.1} parent=11 // pred_check
        %p211 = pneg %p83
      $region18: #{tpu_custom_call.1} parent=11 // pred_check_branch
        %213 = sbr.rel (%p211) target = $region20
      $region19: #{tpu_custom_call.1} parent=11 // pred_region
        _
      $region20: #{tpu_custom_call.1} parent=11 // pred_fallthru
        _
      // Predicated region
      $region21: #{tpu_custom_call.1} parent=11 // pred_check
        %p214 = pneg %p104
      $region22: #{tpu_custom_call.1} parent=11 // pred_check_branch
        %216 = sbr.rel (%p214) target = $region24
      $region23: #{tpu_custom_call.1} parent=11 // pred_region
        _
      $region24: #{tpu_custom_call.1} parent=11 // pred_fallthru
        _
      // Predicated region
      $region25: #{tpu_custom_call.1} parent=11 // pred_check
        %p217 = pneg %p125
      $region26: #{tpu_custom_call.1} parent=11 // pred_check_branch
        %219 = sbr.rel (%p217) target = $region28
      $region27: #{tpu_custom_call.1} parent=11 // pred_region
        _
      $region28: #{tpu_custom_call.1} parent=11 // pred_fallthru
        _
      // Predicated region
      $region29: #{tpu_custom_call.1} parent=11 // pred_check
        %p220 = pneg %p146
      $region30: #{tpu_custom_call.1} parent=11 // pred_check_branch
        %222 = sbr.rel (%p220) target = $region32
      $region31: #{tpu_custom_call.1} parent=11 // pred_region
        _
      $region32: #{tpu_custom_call.1} parent=11 // pred_fallthru
        _
      // Predicated region
      $region33: #{tpu_custom_call.1} parent=11 // pred_check
        %p223 = pneg %p167
      $region34: #{tpu_custom_call.1} parent=11 // pred_check_branch
        %225 = sbr.rel (%p223) target = $region36
      $region35: #{tpu_custom_call.1} parent=11 // pred_region
        _
      $region36: #{tpu_custom_call.1} parent=11 // pred_fallthru
        _
    $region12: #{tpu_custom_call.1} parent=5 // pred_fallthru
      _
    %p226 = scmp.lt.s32.totalorder %s15, 2
    // Predicated region
    $region37: #{tpu_custom_call.1} parent=5 // pred_check
      %p227 = pneg %p226
    $region38: #{tpu_custom_call.1} parent=5 // pred_check_branch
      %229 = sbr.rel (%p227) target = $region40
    $region39: #{tpu_custom_call.1} parent=5 // pred_region
      // Predicated region
      $region41: #{tpu_custom_call.1} parent=39 // pred_check
        %p230 = pneg %p35
      $region42: #{tpu_custom_call.1} parent=39 // pred_check_branch
        %232 = sbr.rel (%p230) target = $region44
      $region43: #{tpu_custom_call.1} parent=39 // pred_region
        %s233 = smul.u32 16, %s15
        %p234 = scmp.lt.s32.totalorder %s233, 31
        %s235 = scalar_select %p234, %s233, 31
        %s236 = smul.addr %s235, 8
        %s237 = scalar_lea.vmem %s0, %s236
        %s238 = smul.u32 16, %s15
      $region44: #{tpu_custom_call.1} parent=39 // pred_fallthru
        _
    $region40: #{tpu_custom_call.1} parent=5 // pred_fallthru
      _
    %p239 = scmp.le.s32.totalorder 1, %s15
    %p240 = scmp.lt.s32.totalorder %s15, 3
    %p241 = pnand %p239, %p240
    %p242 = pneg %p241
    // Predicated region
    $region45: #{tpu_custom_call.1} parent=5 // pred_check
      _
    $region46: #{tpu_custom_call.1} parent=5 // pred_check_branch
      %244 = sbr.rel (%p241) target = $region48
    $region47: #{tpu_custom_call.1} parent=5 // pred_region
      %s245 = ssub.s32 %s15, 1
      %s246 = smul.u32 16, %s20
      %p247 = scmp.lt.s32.totalorder %s246, 31
      %s248 = scalar_select %p247, %s246, 31
      %s249 = smul.addr %s248, 8
      %s250 = scalar_lea.vmem %s0, %s249
      %p251 = pneg %p41
      %p252 = pneg %p38
      %p253 = pneg %p62
      %p254 = pneg %p59
      %p255 = pneg %p83
      %p256 = pneg %p80
      %p257 = pneg %p104
      %p258 = pneg %p101
      %p259 = pneg %p125
      %p260 = pneg %p122
      %p261 = pneg %p146
      %p262 = pneg %p143
      %p263 = pneg %p167
      %p264 = pneg %p164
      %p265 = pneg %p193
      %p266 = pneg %p190
      %s267 = smul.u32 16, %s20
      %p268 = scmp.lt.s32.totalorder %s267, 31
      %s269 = scalar_select %p268, %s267, 31
      %s270 = smul.addr %s269, 8
      %s271 = scalar_lea.vmem %s7, %s270
      %s272 = smul.u32 16, %s20
      %p273 = scmp.lt.s32.totalorder %s272, 31
      %s274 = scalar_select %p273, %s272, 31
      %s275 = smul.addr %s274, 8
      %s276 = scalar_lea.vmem %s0, %s275
      %s277 = smul.u32 16, %s20
      %s278 = smul.u32 16, %s20
      %p279 = scmp.lt.s32.totalorder %s278, 31
      %s280 = scalar_select %p279, %s278, 31
      %s281 = smul.addr %s280, 8
      %s282 = scalar_lea.vmem %s7, %s281
      %s283 = smul.u32 16, %s20
      %v285 = vld [vmem:[%s276] sm:$0xff]
      %v286 = vld [vmem:[%s276 + $0x8] sm:$0xff]
      %v287 = vld [vmem:[%s276 + $0x10] sm:$0xff]
      %v288 = vld [vmem:[%s276 + $0x18] sm:$0xff]
      %v289 = vld [vmem:[%s276 + $0x20] sm:$0xff]
      %v290 = vld [vmem:[%s276 + $0x28] sm:$0xff]
      %v291 = vld [vmem:[%s276 + $0x30] sm:$0xff]
      %v292 = vld [vmem:[%s276 + $0x38] sm:$0xff]
      %v293 = vld [vmem:[%s276 + $0x40] sm:$0xff]
      %v294 = vld [vmem:[%s276 + $0x48] sm:$0xff]
      %v295 = vld [vmem:[%s276 + $0x50] sm:$0xff]
      %v296 = vld [vmem:[%s276 + $0x58] sm:$0xff]
      %v297 = vld [vmem:[%s276 + $0x60] sm:$0xff]
      %v298 = vld [vmem:[%s276 + $0x68] sm:$0xff]
      %v299 = vld [vmem:[%s276 + $0x70] sm:$0xff]
      %v300 = vld [vmem:[%s276 + $0x78] sm:$0xff]
      %v301 = vld [vmem:[%s1] sm:$0xf]
      %v302 = vld [vmem:[%s1 + $0x4] sm:$0xf]
      %v303 = vld [vmem:[%s1 + $0x8] sm:$0xf]
      %v304 = vld [vmem:[%s1 + $0xc] sm:$0xf]
      %v305 = vld [vmem:[%s2] sm:$0x1]
      %v306 = vpack.c.bf16 %v286, %v285
      %v307 = vpack.c.bf16 %v288, %v287
      %v308 = vpack.c.bf16 %v290, %v289
      %v309 = vpack.c.bf16 %v292, %v291
      %v310 = vpack.c.bf16 %v294, %v293
      %v311 = vpack.c.bf16 %v296, %v295
      %v312 = vpack.c.bf16 %v298, %v297
      %v313 = vpack.c.bf16 %v300, %v299
      %v315 = vperm.slane %v305, 0
      %v321 = vunpack.c.l.b16 %v301
      %v322 = vunpack.c.l.b16 %v302
      %v323 = vunpack.c.l.b16 %v303
      %v324 = vunpack.c.l.b16 %v304
      %v325 = vpack.c.b16 %v322, %v321
      %v326 = vpack.c.b16 %v324, %v323
      %vm329 = vcmask 261120
      %v331 = vsel %vm329, %v306, 0
      %v334 = vsel %vm329, %v307, 0
      %v337 = vsel %vm329, %v308, 0
      %v340 = vsel %vm329, %v309, 0
      %v343 = vsel %vm329, %v310, 0
      %v346 = vsel %vm329, %v311, 0
      %v349 = vsel %vm329, %v312, 0
      %v352 = vsel %vm329, %v313, 0
      %354 = vmatpush.bf16.msra.mxu0 0
      %355 = vmatpush.bf16.msra.mxu0 0
      %356 = vmatpush.bf16.msra.mxu0 0
      %357 = vmatpush.bf16.msra.mxu0 0
      %358 = vmatpush.bf16.msra.mxu0 0
      %359 = vmatpush.bf16.msra.mxu0 0
      %360 = vmatpush.bf16.msra.mxu0 %v326
      %361 = vmatpush.bf16.msra.mxu0 %v325
      %362 = vmatmul.bf16.gmra.mxu0 %v331
      %v363 = vpop.f32.mrf.mxu0
      %v364 = vadd.f32 %v315, %v363
      %v365 = vpop.f32.mrf.mxu0
      %v366 = vadd.f32 %v315, %v365
      %367 = vmatmul.bf16.gmra.mxu0 %v334
      %v368 = vpop.f32.mrf.mxu0
      %v369 = vadd.f32 %v315, %v368
      %v370 = vpop.f32.mrf.mxu0
      %v371 = vadd.f32 %v315, %v370
      %372 = vmatmul.bf16.gmra.mxu0 %v337
      %v373 = vpop.f32.mrf.mxu0
      %v374 = vadd.f32 %v315, %v373
      %v375 = vpop.f32.mrf.mxu0
      %v376 = vadd.f32 %v315, %v375
      %377 = vmatmul.bf16.gmra.mxu0 %v340
      %v378 = vpop.f32.mrf.mxu0
      %v379 = vadd.f32 %v315, %v378
      %v380 = vpop.f32.mrf.mxu0
      %v381 = vadd.f32 %v315, %v380
      %382 = vmatmul.bf16.gmra.mxu0 %v343
      %v383 = vpop.f32.mrf.mxu0
      %v384 = vadd.f32 %v315, %v383
      %v385 = vpop.f32.mrf.mxu0
      %v386 = vadd.f32 %v315, %v385
      %387 = vmatmul.bf16.gmra.mxu0 %v346
      %v388 = vpop.f32.mrf.mxu0
      %v389 = vadd.f32 %v315, %v388
      %v390 = vpop.f32.mrf.mxu0
      %v391 = vadd.f32 %v315, %v390
      %392 = vmatmul.bf16.gmra.mxu0 %v349
      %v393 = vpop.f32.mrf.mxu0
      %v394 = vadd.f32 %v315, %v393
      %v395 = vpop.f32.mrf.mxu0
      %v396 = vadd.f32 %v315, %v395
      %397 = vmatmul.bf16.gmra.mxu0 %v352
      %v398 = vpop.f32.mrf.mxu0
      %v399 = vadd.f32 %v315, %v398
      %v400 = vpop.f32.mrf.mxu0
      %v401 = vadd.f32 %v315, %v400
      %402 = vdwg.mxu0
      %v403 = vtanh.pop %v364
      %v404 = vtanh.pop %v366
      %v405 = vtanh.pop %v369
      %v406 = vtanh.pop %v371
      %v407 = vtanh.pop %v374
      %v408 = vtanh.pop %v376
      %v409 = vtanh.pop %v379
      %v410 = vtanh.pop %v381
      %v411 = vtanh.pop %v384
      %v412 = vtanh.pop %v386
      %v413 = vtanh.pop %v389
      %v414 = vtanh.pop %v391
      %v415 = vtanh.pop %v394
      %v416 = vtanh.pop %v396
      %v417 = vtanh.pop %v399
      %v418 = vtanh.pop %v401
      %v419 = vld [vmem:[%s3] sm:$0xf]
      %v420 = vld [vmem:[%s3 + $0x4] sm:$0xf]
      %v421 = vld [vmem:[%s3 + $0x8] sm:$0xf]
      %v422 = vld [vmem:[%s3 + $0xc] sm:$0xf]
      %v423 = vld [vmem:[%s3 + $0x10] sm:$0xf]
      %v424 = vld [vmem:[%s3 + $0x14] sm:$0xf]
      %v425 = vld [vmem:[%s3 + $0x18] sm:$0xf]
      %v426 = vld [vmem:[%s3 + $0x1c] sm:$0xf]
      %v427 = vld [vmem:[%s4] sm:$0x1]
      %v428 = vpack.c.bf16 %v404, %v403
      %v429 = vpack.c.bf16 %v406, %v405
      %v430 = vpack.c.bf16 %v408, %v407
      %v431 = vpack.c.bf16 %v410, %v409
      %v432 = vpack.c.bf16 %v412, %v411
      %v433 = vpack.c.bf16 %v414, %v413
      %v434 = vpack.c.bf16 %v416, %v415
      %v435 = vpack.c.bf16 %v418, %v417
      %v437 = vperm.slane %v427, 0
      %v447 = vunpack.c.l.b16 %v419
      %v448 = vunpack.c.l.b16 %v420
      %v449 = vunpack.c.l.b16 %v421
      %v450 = vunpack.c.l.b16 %v422
      %v451 = vunpack.c.l.b16 %v423
      %v452 = vunpack.c.l.b16 %v424
      %v453 = vunpack.c.l.b16 %v425
      %v454 = vunpack.c.l.b16 %v426
      %v455 = vpack.c.b16 %v448, %v447
      %v456 = vpack.c.b16 %v450, %v449
      %v457 = vpack.c.b16 %v452, %v451
      %v458 = vpack.c.b16 %v454, %v453
      %vm463 = vcmask 523264
      %v465 = vsel %vm463, %v428, 0
      %v468 = vsel %vm463, %v429, 0
      %v471 = vsel %vm463, %v430, 0
      %v474 = vsel %vm463, %v431, 0
      %v477 = vsel %vm463, %v432, 0
      %v480 = vsel %vm463, %v433, 0
      %v483 = vsel %vm463, %v434, 0
      %v486 = vsel %vm463, %v435, 0
      %488 = vmatpush.bf16.msra.mxu0 0
      %489 = vmatpush.bf16.msra.mxu0 0
      %490 = vmatpush.bf16.msra.mxu0 0
      %491 = vmatpush.bf16.msra.mxu0 0
      %492 = vmatpush.bf16.msra.mxu0 %v458
      %493 = vmatpush.bf16.msra.mxu0 %v457
      %494 = vmatpush.bf16.msra.mxu0 %v456
      %495 = vmatpush.bf16.msra.mxu0 %v455
      %496 = vmatmul.bf16.gmra.mxu0 %v465
      %v497 = vpop.f32.mrf.mxu0
      %v498 = vadd.f32 %v437, %v497
      %v499 = vpop.f32.mrf.mxu0
      %v500 = vadd.f32 %v437, %v499
      %501 = vmatmul.bf16.gmra.mxu0 %v468
      %v502 = vpop.f32.mrf.mxu0
      %v503 = vadd.f32 %v437, %v502
      %v504 = vpop.f32.mrf.mxu0
      %v505 = vadd.f32 %v437, %v504
      %506 = vmatmul.bf16.gmra.mxu0 %v471
      %v507 = vpop.f32.mrf.mxu0
      %v508 = vadd.f32 %v437, %v507
      %v509 = vpop.f32.mrf.mxu0
      %v510 = vadd.f32 %v437, %v509
      %511 = vmatmul.bf16.gmra.mxu0 %v474
      %v512 = vpop.f32.mrf.mxu0
      %v513 = vadd.f32 %v437, %v512
      %v514 = vpop.f32.mrf.mxu0
      %v515 = vadd.f32 %v437, %v514
      %516 = vmatmul.bf16.gmra.mxu0 %v477
      %v517 = vpop.f32.mrf.mxu0
      %v518 = vadd.f32 %v437, %v517
      %v519 = vpop.f32.mrf.mxu0
      %v520 = vadd.f32 %v437, %v519
      %521 = vmatmul.bf16.gmra.mxu0 %v480
      %v522 = vpop.f32.mrf.mxu0
      %v523 = vadd.f32 %v437, %v522
      %v524 = vpop.f32.mrf.mxu0
      %v525 = vadd.f32 %v437, %v524
      %526 = vmatmul.bf16.gmra.mxu0 %v483
      %v527 = vpop.f32.mrf.mxu0
      %v528 = vadd.f32 %v437, %v527
      %v529 = vpop.f32.mrf.mxu0
      %v530 = vadd.f32 %v437, %v529
      %531 = vmatmul.bf16.gmra.mxu0 %v486
      %v532 = vpop.f32.mrf.mxu0
      %v533 = vadd.f32 %v437, %v532
      %v534 = vpop.f32.mrf.mxu0
      %v535 = vadd.f32 %v437, %v534
      %536 = vdwg.mxu0
      %v537 = vtanh.pop %v498
      %v538 = vtanh.pop %v500
      %v539 = vtanh.pop %v503
      %v540 = vtanh.pop %v505
      %v541 = vtanh.pop %v508
      %v542 = vtanh.pop %v510
      %v543 = vtanh.pop %v513
      %v544 = vtanh.pop %v515
      %v545 = vtanh.pop %v518
      %v546 = vtanh.pop %v520
      %v547 = vtanh.pop %v523
      %v548 = vtanh.pop %v525
      %v549 = vtanh.pop %v528
      %v550 = vtanh.pop %v530
      %v551 = vtanh.pop %v533
      %v552 = vtanh.pop %v535
      %v553 = vld [vmem:[%s5] sm:$0xf]
      %v554 = vld [vmem:[%s5 + $0x4] sm:$0xf]
      %v555 = vld [vmem:[%s5 + $0x8] sm:$0xf]
      %v556 = vld [vmem:[%s5 + $0xc] sm:$0xf]
      %v557 = vld [vmem:[%s5 + $0x10] sm:$0xf]
      %v558 = vld [vmem:[%s5 + $0x14] sm:$0xf]
      %v559 = vld [vmem:[%s5 + $0x18] sm:$0xf]
      %v560 = vld [vmem:[%s5 + $0x1c] sm:$0xf]
      %v561 = vld [vmem:[#allocation2] sm:$0x1]
      %v562 = vpack.c.bf16 %v538, %v537
      %v563 = vpack.c.bf16 %v540, %v539
      %v564 = vpack.c.bf16 %v542, %v541
      %v565 = vpack.c.bf16 %v544, %v543
      %v566 = vpack.c.bf16 %v546, %v545
      %v567 = vpack.c.bf16 %v548, %v547
      %v568 = vpack.c.bf16 %v550, %v549
      %v569 = vpack.c.bf16 %v552, %v551
      %v571 = vperm.slane %v561, 0
      %v581 = vunpack.c.l.b16 %v553
      %v582 = vunpack.c.l.b16 %v554
      %v583 = vunpack.c.l.b16 %v555
      %v584 = vunpack.c.l.b16 %v556
      %v585 = vunpack.c.l.b16 %v557
      %v586 = vunpack.c.l.b16 %v558
      %v587 = vunpack.c.l.b16 %v559
      %v588 = vunpack.c.l.b16 %v560
      %v589 = vpack.c.b16 %v582, %v581
      %v590 = vpack.c.b16 %v584, %v583
      %v591 = vpack.c.b16 %v586, %v585
      %v592 = vpack.c.b16 %v588, %v587
      %v598 = vsel %vm463, %v562, 0
      %v601 = vsel %vm463, %v563, 0
      %v604 = vsel %vm463, %v564, 0
      %v607 = vsel %vm463, %v565, 0
      %v610 = vsel %vm463, %v566, 0
      %v613 = vsel %vm463, %v567, 0
      %v616 = vsel %vm463, %v568, 0
      %v619 = vsel %vm463, %v569, 0
      %621 = vmatpush.bf16.msra.mxu0 0
      %622 = vmatpush.bf16.msra.mxu0 0
      %623 = vmatpush.bf16.msra.mxu0 0
      %624 = vmatpush.bf16.msra.mxu0 0
      %625 = vmatpush.bf16.msra.mxu0 %v592
      %626 = vmatpush.bf16.msra.mxu0 %v591
      %627 = vmatpush.bf16.msra.mxu0 %v590
      %628 = vmatpush.bf16.msra.mxu0 %v589
      %629 = vmatmul.bf16.gmra.mxu0 %v598
      %v630 = vpop.f32.mrf.mxu0
      %v631 = vadd.f32 %v571, %v630
      %v632 = vpop.f32.mrf.mxu0
      %v633 = vadd.f32 %v571, %v632
      %634 = vmatmul.bf16.gmra.mxu0 %v601
      %v635 = vpop.f32.mrf.mxu0
      %v636 = vadd.f32 %v571, %v635
      %v637 = vpop.f32.mrf.mxu0
      %v638 = vadd.f32 %v571, %v637
      %639 = vmatmul.bf16.gmra.mxu0 %v604
      %v640 = vpop.f32.mrf.mxu0
      %v641 = vadd.f32 %v571, %v640
      %v642 = vpop.f32.mrf.mxu0
      %v643 = vadd.f32 %v571, %v642
      %644 = vmatmul.bf16.gmra.mxu0 %v607
      %v645 = vpop.f32.mrf.mxu0
      %v646 = vadd.f32 %v571, %v645
      %v647 = vpop.f32.mrf.mxu0
      %v648 = vadd.f32 %v571, %v647
      %649 = vmatmul.bf16.gmra.mxu0 %v610
      %v650 = vpop.f32.mrf.mxu0
      %v651 = vadd.f32 %v571, %v650
      %v652 = vpop.f32.mrf.mxu0
      %v653 = vadd.f32 %v571, %v652
      %654 = vmatmul.bf16.gmra.mxu0 %v613
      %v655 = vpop.f32.mrf.mxu0
      %v656 = vadd.f32 %v571, %v655
      %v657 = vpop.f32.mrf.mxu0
      %v658 = vadd.f32 %v571, %v657
      %659 = vmatmul.bf16.gmra.mxu0 %v616
      %v660 = vpop.f32.mrf.mxu0
      %v661 = vadd.f32 %v571, %v660
      %v662 = vpop.f32.mrf.mxu0
      %v663 = vadd.f32 %v571, %v662
      %664 = vmatmul.bf16.gmra.mxu0 %v619
      %v665 = vpop.f32.mrf.mxu0
      %v666 = vadd.f32 %v571, %v665
      %v667 = vpop.f32.mrf.mxu0
      %v668 = vadd.f32 %v571, %v667
      %669 = vdwg.mxu0
      %vm670 = vcmask 7168
      %671 = vst.msk [vmem:[%s282] sm:$0xff] %vm670, %v631
      %672 = vst.msk [vmem:[%s282 + $0x8] sm:$0xff] %vm670, %v633
      %673 = vst.msk [vmem:[%s282 + $0x10] sm:$0xff] %vm670, %v636
      %674 = vst.msk [vmem:[%s282 + $0x18] sm:$0xff] %vm670, %v638
      %675 = vst.msk [vmem:[%s282 + $0x20] sm:$0xff] %vm670, %v641
      %676 = vst.msk [vmem:[%s282 + $0x28] sm:$0xff] %vm670, %v643
      %677 = vst.msk [vmem:[%s282 + $0x30] sm:$0xff] %vm670, %v646
      %678 = vst.msk [vmem:[%s282 + $0x38] sm:$0xff] %vm670, %v648
      %679 = vst.msk [vmem:[%s282 + $0x40] sm:$0xff] %vm670, %v651
      %680 = vst.msk [vmem:[%s282 + $0x48] sm:$0xff] %vm670, %v653
      %681 = vst.msk [vmem:[%s282 + $0x50] sm:$0xff] %vm670, %v656
      %682 = vst.msk [vmem:[%s282 + $0x58] sm:$0xff] %vm670, %v658
      %683 = vst.msk [vmem:[%s282 + $0x60] sm:$0xff] %vm670, %v661
      %684 = vst.msk [vmem:[%s282 + $0x68] sm:$0xff] %vm670, %v663
      %685 = vst.msk [vmem:[%s282 + $0x70] sm:$0xff] %vm670, %v666
      %686 = vst.msk [vmem:[%s282 + $0x78] sm:$0xff] %vm670, %v668
      %s687 = smul.u32 16, %s20
      %p688 = scmp.lt.s32.totalorder %s687, 31
      %s689 = scalar_select %p688, %s687, 31
      %s690 = smul.addr %s689, 8
      %s691 = scalar_lea.vmem %s7, %s690
      // Predicated region
      $region49: #{tpu_custom_call.1} parent=47 // pred_check
        %p692 = pneg %p190
      $region50: #{tpu_custom_call.1} parent=47 // pred_check_branch
        %694 = sbr.rel (%p692) target = $region52
      $region51: #{tpu_custom_call.1} parent=47 // pred_region
        %s695 = smul.u32 16, %s20
      $region52: #{tpu_custom_call.1} parent=47 // pred_fallthru
        _
    $region48: #{tpu_custom_call.1} parent=5 // pred_fallthru
      _
    %p696 = scmp.le.s32.totalorder 2, %s15
    // Predicated region
    $region53: #{tpu_custom_call.1} parent=5 // pred_check
      %p697 = pneg %p696
    $region54: #{tpu_custom_call.1} parent=5 // pred_check_branch
      %699 = sbr.rel (%p697) target = $region56
    $region55: #{tpu_custom_call.1} parent=5 // pred_region
      %s700 = ssub.s32 %s15, 2
      // Predicated region
      $region57: #{tpu_custom_call.1} parent=55 // pred_check
        %p701 = pneg %p196
      $region58: #{tpu_custom_call.1} parent=55 // pred_check_branch
        %703 = sbr.rel (%p701) target = $region60
      $region59: #{tpu_custom_call.1} parent=55 // pred_region
        %s704 = smul.u32 16, %s21
        %p705 = scmp.lt.s32.totalorder %s704, 31
        %s706 = scalar_select %p705, %s704, 31
        %s707 = smul.addr %s706, 8
        %s708 = scalar_lea.vmem %s7, %s707
      $region60: #{tpu_custom_call.1} parent=55 // pred_fallthru
        _
    $region56: #{tpu_custom_call.1} parent=5 // pred_fallthru
      _
  $region6: #{tpu_custom_call.1} parent=0 // loop_footer
    %s19 = sadd.s32 1, %s15
  $region7: #{tpu_custom_call.1} parent=0 // loop_footer_branch
    %14 = sbr.rel target = $region3
  $region8: #{tpu_custom_call.1} parent=0 // loop_exit
    _

</llo_original>
